<compile_context>
chip_gen: v7x
topology: tpu7x:2x2x1
jax: 0.10.0
libtpu: 0.0.40
codegen_flags: <defaults>
</compile_context>

<pallas_src>
import functools
import inspect

import jax
import jax.numpy as jnp
from jax.experimental import pallas as pl
from jax.experimental.pallas import tpu as pltpu

LANE = 128                  # TPU lane width (last-dim granularity)
DEFAULT_BATCH_TILE = 256    # v6e/v7x MXU is 2x256x256; use 128 on v5e
DEFAULT_COL_TILE = 512      # max fc4 output-column tile (multiple of 128)

# Does this jax expose BlockSpec(pipeline_mode=pl.Buffered(n))?
_BLOCKSPEC_HAS_PIPELINE_MODE = (
    hasattr(pl, "Buffered")
    and "pipeline_mode" in inspect.signature(pl.BlockSpec).parameters)
# Flipped off at runtime if Buffered(1) is rejected by this jax build.
_STATE = {"single_buffer_residents": _BLOCKSPEC_HAS_PIPELINE_MODE}


def _round_up(x, m):
    return ((x + m - 1) // m) * m


def _cdiv(a, b):
    return (a + b - 1) // b


def _pick_batch_tile(B, batch_tile):
    """Balanced batch tile: minimizes padding and gives >=2 'parallel' steps
    (for v7x's 2 TensorCores) whenever B >= 16."""
    if B < 16:
        return B                                  # single full-extent block
    nt = max(2, _cdiv(B, batch_tile))
    return min(batch_tile, _round_up(_cdiv(B, nt), 8))


def _pick_col_tile(out_dim_p, max_col_tile):
    """Largest multiple of 128 <= max_col_tile that divides the padded fc4 width."""
    cap = min(max_col_tile, out_dim_p)
    for cand in range(cap, LANE - 1, -LANE):
        if out_dim_p % cand == 0:
            return cand
    return LANE


def mlp_decoder_kernel(x_ref,
                       w1_ref, b1_ref,
                       w2_ref, b2_ref,
                       w3_ref, b3_ref,
                       w4_ref, b4_ref,
                       out_ref, h_ref):
    """One (batch-tile i, fc4-column-tile j) grid step.

    fc1..fc3 (+ReLU) run once per batch tile (j == 0) and are cached in the VMEM
    scratch h_ref; every column step runs only its fc4 tile.  MXU inputs use the
    weight storage dtype (bf16 by default); accumulation is f32 via
    preferred_element_type; bias + ReLU epilogues stay f32.
    """
    cd = w1_ref.dtype

    @pl.when(pl.program_id(1) == 0)
    def _():
        h = jnp.dot(x_ref[...].astype(cd), w1_ref[...],
                    preferred_element_type=jnp.float32) + b1_ref[...]
        h = jnp.maximum(h, 0.0).astype(cd)                       # ReLU
        h = jnp.dot(h, w2_ref[...],
                    preferred_element_type=jnp.float32) + b2_ref[...]
        h = jnp.maximum(h, 0.0).astype(cd)                       # ReLU
        h = jnp.dot(h, w3_ref[...],
                    preferred_element_type=jnp.float32) + b3_ref[...]
        h_ref[...] = jnp.maximum(h, 0.0).astype(h_ref.dtype)     # ReLU

    out = jnp.dot(h_ref[...], w4_ref[...],
                  preferred_element_type=jnp.float32) + b4_ref[...]
    out_ref[...] = out.astype(out_ref.dtype)                      # fc4: no activation


@functools.partial(jax.jit, static_argnames=("seq_len", "input_size", "batch_tile",
                                              "max_col_tile", "out_dtype",
                                              "single_buffer_residents"))
def _mlp_decoder_forward_impl(x, params, *, seq_len, input_size, batch_tile,
                              max_col_tile, out_dtype, single_buffer_residents):
    B, latent_dim = x.shape
    w1, b1, w2, b2, w3, b3, w4, b4 = params
    H = w1.shape[1]
    wdt = w1.dtype
    wbytes = jnp.dtype(wdt).itemsize
    obytes = jnp.dtype(out_dtype).itemsize
    out_dim = seq_len * input_size

    # ---- lane-dense zero padding (exact through ReLU / zero weight rows) -------
    # TODO(synk): for production, pre-pad the weights once outside the call instead
    # of re-padding under jit on every invocation.
    Lp = _round_up(latent_dim, LANE)
    Hp = _round_up(H, LANE)
    out_dim_p = _round_up(out_dim, LANE)
    tn = _pick_col_tile(out_dim_p, max_col_tile)

    if Lp != latent_dim:
        x = jnp.pad(x, ((0, 0), (0, Lp - latent_dim)))
        w1 = jnp.pad(w1, ((0, Lp - latent_dim), (0, 0)))
    if Hp != H:
        w1 = jnp.pad(w1, ((0, 0), (0, Hp - H)))
        b1 = jnp.pad(b1, ((0, 0), (0, Hp - H)))
        w2 = jnp.pad(w2, ((0, Hp - H), (0, Hp - H)))
        b2 = jnp.pad(b2, ((0, 0), (0, Hp - H)))
        w3 = jnp.pad(w3, ((0, Hp - H), (0, Hp - H)))
        b3 = jnp.pad(b3, ((0, 0), (0, Hp - H)))
        w4 = jnp.pad(w4, ((0, Hp - H), (0, 0)))
    if out_dim_p != out_dim:
        w4 = jnp.pad(w4, ((0, 0), (0, out_dim_p - out_dim)))
        b4 = jnp.pad(b4, ((0, 0), (0, out_dim_p - out_dim)))

    # ---- batch tiling -----------------------------------------------------------
    tb = _pick_batch_tile(B, batch_tile)
    B_pad = _round_up(B, tb)
    if B_pad != B:
        x = jnp.pad(x, ((0, B_pad - B), (0, 0)))
    grid = (B_pad // tb, out_dim_p // tn)

    # fc1-fc3 weights/biases: full-array blocks whose block index never changes ->
    # resident in VMEM across the whole grid; single-buffered when supported
    # (double-buffering a constant block only doubles its VMEM footprint).
    def resident(a):
        if single_buffer_residents:
            return pl.BlockSpec(a.shape, lambda i, j: (0, 0),
                                pipeline_mode=pl.Buffered(1))
        return pl.BlockSpec(a.shape, lambda i, j: (0, 0))

    # ---- explicit VMEM accounting (v7x has 64 MiB physical, 32 MiB default scoped)
    resident_buf = 1 if single_buffer_residents else 2
    vmem_need = (
        resident_buf * ((Lp * Hp + 2 * Hp * Hp) * wbytes + 3 * 8 * Hp * 4)  # fc1-3 w+b
        + 2 * (Hp * tn * wbytes + 8 * tn * 4)   # w4 / b4 column tiles, double-buffered
        + 2 * tb * Lp * 4                       # x tile, double-buffered
        + 2 * tb * tn * obytes                  # output tile, double-buffered
        + tb * Hp * wbytes                      # hidden-activation scratch
        + 4 * tb * max(Hp, tn) * 4)             # live f32 intermediates / epilogues
    vmem_limit = int(max(16 * 2**20, min(2 * vmem_need, 96 * 2**20)))

    # Advisory cost estimate so XLA can overlap this call with its neighbours.
    nb = B_pad // tb
    flops = 2 * B_pad * (Lp * Hp + 2 * Hp * Hp + Hp * out_dim_p)
    bytes_accessed = (
        B_pad * Lp * 4
        + (Lp * Hp + 2 * Hp * Hp) * wbytes + 3 * Hp * 4        # resident fc1-3 once
        + nb * (Hp * out_dim_p * wbytes + out_dim_p * 4)        # w4/b4 per batch tile
        + B_pad * out_dim_p * obytes)

    flat = pl.pallas_call(
        mlp_decoder_kernel,
        out_shape=jax.ShapeDtypeStruct((B_pad, out_dim_p), out_dtype),
        grid=grid,
        in_specs=[
            pl.BlockSpec((tb, Lp), lambda i, j: (i, 0)),        # x: per batch tile
            resident(w1), resident(b1),
            resident(w2), resident(b2),
            resident(w3), resident(b3),
            pl.BlockSpec((Hp, tn), lambda i, j: (0, j)),        # w4: column-tiled (prefetched)
            pl.BlockSpec((1, tn), lambda i, j: (0, j)),         # b4: column-tiled
        ],
        out_specs=pl.BlockSpec((tb, tn), lambda i, j: (i, j)),
        scratch_shapes=[pltpu.VMEM((tb, Hp), wdt)],             # fc3 activations, reused over j
        compiler_params=pltpu.CompilerParams(
            dimension_semantics=("parallel", "arbitrary"),      # batch sharded; j carries scratch
            vmem_limit_bytes=vmem_limit),
        cost_estimate=pl.CostEstimate(flops=int(flops), transcendentals=0,
                                      bytes_accessed=int(bytes_accessed)),
    )(x, w1, b1, w2, b2, w3, b3, w4, b4)

    # Only slice (an extra HBM pass over the output) when padding was unavoidable.
    if B_pad != B or out_dim_p != out_dim:
        flat = flat[:B, :out_dim]
    return flat.reshape(B, seq_len, input_size)


def mlp_decoder_forward(x, params, *, seq_len, input_size,
                        batch_tile=DEFAULT_BATCH_TILE,
                        max_col_tile=DEFAULT_COL_TILE,
                        out_dtype=jnp.float32):
    """x: [B, latent_dim] f32 -> [B, seq_len, input_size] (out_dtype)."""
    kwargs = dict(seq_len=seq_len, input_size=input_size, batch_tile=batch_tile,
                  max_col_tile=max_col_tile, out_dtype=out_dtype)
    if _STATE["single_buffer_residents"]:
        try:
            return _mlp_decoder_forward_impl(x, params,
                                             single_buffer_residents=True, **kwargs)
        except Exception:
            # This jax build rejects pl.Buffered(1) on pallas_call BlockSpecs:
            # fall back to default double-buffering (correctness unchanged).
            _STATE["single_buffer_residents"] = False
    return _mlp_decoder_forward_impl(x, params,
                                     single_buffer_residents=False, **kwargs)


def init_params(key, latent_dim, hidden_size, seq_len, input_size,
                weight_dtype=jnp.bfloat16):
    """PyTorch-style uniform(-1/sqrt(fan_in), +1/sqrt(fan_in)) init.

    Weights stored [in, out] (kernel computes x @ W + b) in bf16 for MXU-native
    matmuls and halved HBM traffic; biases kept f32 (the epilogue is f32).
    Pass weight_dtype=jnp.float32 for bit-faithful PyTorch f32 semantics.
    # TODO(synk): optional fp8(e4m3) weight storage + per-channel f32 scales for
    # v7x's fp8 MXU is not implemented (not a win on v5e/v6e).
    """
    def linear(k, fan_in, fan_out):
        kw, kb = jax.random.split(k)
        bound = 1.0 / jnp.sqrt(jnp.float32(fan_in))
        w = jax.random.uniform(kw, (fan_in, fan_out), jnp.float32, -bound, bound)
        b = jax.random.uniform(kb, (1, fan_out), jnp.float32, -bound, bound)
        return w.astype(weight_dtype), b

    k1, k2, k3, k4 = jax.random.split(key, 4)
    w1, b1 = linear(k1, latent_dim, hidden_size)
    w2, b2 = linear(k2, hidden_size, hidden_size)
    w3, b3 = linear(k3, hidden_size, hidden_size)
    w4, b4 = linear(k4, hidden_size, seq_len * input_size)
    return (w1, b1, w2, b2, w3, b3, w4, b4)


def reference_forward(x, params, seq_len, input_size):
    """Pure-JAX reference with identical precision (bf16 MXU inputs, f32 accumulate)."""
    w1, b1, w2, b2, w3, b3, w4, b4 = params
    cd = w1.dtype
    h = jnp.maximum(jnp.dot(x.astype(cd), w1, preferred_element_type=jnp.float32) + b1, 0.0)
    h = jnp.maximum(jnp.dot(h.astype(cd), w2, preferred_element_type=jnp.float32) + b2, 0.0)
    h = jnp.maximum(jnp.dot(h.astype(cd), w3, preferred_element_type=jnp.float32) + b3, 0.0)
    h = jnp.dot(h.astype(cd), w4, preferred_element_type=jnp.float32) + b4
    return h.reshape(-1, seq_len, input_size)


def reference_forward_f32(x, params, seq_len, input_size):
    """Full-f32 reference of the original PyTorch math (sanity check for bf16 error)."""
    w1, b1, w2, b2, w3, b3, w4, b4 = [p.astype(jnp.float32) for p in params]
    h = jnp.maximum(x @ w1 + b1, 0.0)
    h = jnp.maximum(h @ w2 + b2, 0.0)
    h = jnp.maximum(h @ w3 + b3, 0.0)
    h = h @ w4 + b4
    return h.reshape(-1, seq_len, input_size)


if __name__ == "__main__":
    key = jax.random.PRNGKey(0)
    kx, kp, kx2, kp2 = jax.random.split(key, 4)

    # --- small config consistent with the module's forward ----------------------
    batch, latent_dim, hidden_size, seq_len, input_size = 2, 3, 32, 8, 2
    x = jax.random.normal(kx, (batch, latent_dim), dtype=jnp.float32)
    params = init_params(kp, latent_dim, hidden_size, seq_len, input_size)

    out = jax.block_until_ready(
        mlp_decoder_forward(x, params, seq_len=seq_len, input_size=input_size))
    assert out.shape == (batch, seq_len, input_size), out.shape

    # Exact-semantics reference (same bf16 MXU inputs, f32 accumulation).
    ref = jax.block_until_ready(reference_forward(x, params, seq_len, input_size))
    assert jnp.allclose(out, ref, atol=1e-3, rtol=1e-3), \
        f"mismatch vs bf16 reference: {float(jnp.max(jnp.abs(out - ref)))}"

    # Sanity vs full-f32 PyTorch math (loose tolerance for bf16 weight storage).
    ref32 = jax.block_until_ready(reference_forward_f32(x, params, seq_len, input_size))
    assert float(jnp.max(jnp.abs(out - ref32))) < 5e-2, "mismatch vs f32 reference"

    # --- larger config: exercises balanced batch tiling (+padding), the resident
    # scratch reuse, and the fc4 output-column grid axis (out_dim = 768 -> 2 tiles).
    B2, LD2, HS2, SL2, IS2 = 259, 16, 100, 48, 16
    x2 = jax.random.normal(kx2, (B2, LD2), dtype=jnp.float32)
    params2 = init_params(kp2, LD2, HS2, SL2, IS2)
    out2 = jax.block_until_ready(
        mlp_decoder_forward(x2, params2, seq_len=SL2, input_size=IS2))
    ref2 = jax.block_until_ready(reference_forward(x2, params2, SL2, IS2))
    assert out2.shape == (B2, SL2, IS2), out2.shape
    err2 = float(jnp.max(jnp.abs(out2 - ref2)))
    assert jnp.allclose(out2, ref2, atol=5e-3, rtol=5e-3), \
        f"tiled-path mismatch vs bf16 reference: {err2}"

    print("KERNEL_OK")
</pallas_src>

<mosaic_0001>
module attributes {stable_mosaic.version = 11 : i64} {
  func.func @mlp_decoder_kernel(%arg0: i32, %arg1: i32, %arg2: memref<2x128xf32, #tpu.memory_space<vmem>>, %arg3: memref<128x128xbf16, #tpu.memory_space<vmem>>, %arg4: memref<1x128xf32, #tpu.memory_space<vmem>>, %arg5: memref<128x128xbf16, #tpu.memory_space<vmem>>, %arg6: memref<1x128xf32, #tpu.memory_space<vmem>>, %arg7: memref<128x128xbf16, #tpu.memory_space<vmem>>, %arg8: memref<1x128xf32, #tpu.memory_space<vmem>>, %arg9: memref<128x128xbf16, #tpu.memory_space<vmem>>, %arg10: memref<1x128xf32, #tpu.memory_space<vmem>>, %arg11: memref<2x128xf32, #tpu.memory_space<vmem>>, %arg12: memref<2x128xbf16, #tpu.memory_space<vmem>>) attributes {dimension_semantics = [#tpu.dimension_semantics<parallel>, #tpu.dimension_semantics<arbitrary>], iteration_bounds = array<i64: 1, 1>, scalar_prefetch = 0 : i64, scratch_operands = 1 : i64, tpu.core_type = #tpu.core_type<tc>, window_params = [{transform_indices = @transform_0, window_bounds = array<i64: 2, 128>}, {pipeline_mode = #tpu.pipeline_mode<synchronous>, transform_indices = @transform_1, window_bounds = array<i64: 128, 128>}, {pipeline_mode = #tpu.pipeline_mode<synchronous>, transform_indices = @transform_2, window_bounds = array<i64: 1, 128>}, {pipeline_mode = #tpu.pipeline_mode<synchronous>, transform_indices = @transform_3, window_bounds = array<i64: 128, 128>}, {pipeline_mode = #tpu.pipeline_mode<synchronous>, transform_indices = @transform_4, window_bounds = array<i64: 1, 128>}, {pipeline_mode = #tpu.pipeline_mode<synchronous>, transform_indices = @transform_5, window_bounds = array<i64: 128, 128>}, {pipeline_mode = #tpu.pipeline_mode<synchronous>, transform_indices = @transform_6, window_bounds = array<i64: 1, 128>}, {transform_indices = @transform_7, window_bounds = array<i64: 128, 128>}, {transform_indices = @transform_8, window_bounds = array<i64: 1, 128>}, {transform_indices = @transform_9, window_bounds = array<i64: 2, 128>}]} {
    %c0_i32 = arith.constant 0 : i32
    %0 = arith.cmpi eq, %arg1, %c0_i32 : i32
    %1 = arith.extui %0 : i1 to i32
    %c0_i32_0 = arith.constant 0 : i32
    %2 = arith.cmpi ne, %1, %c0_i32_0 : i32
    scf.if %2 {
      %c0_8 = arith.constant 0 : index
      %c0_9 = arith.constant 0 : index
      %10 = vector.load %arg2[%c0_8, %c0_9] : memref<2x128xf32, #tpu.memory_space<vmem>>, vector<2x128xf32>
      %11 = arith.truncf %10 : vector<2x128xf32> to vector<2x128xbf16>
      %c0_10 = arith.constant 0 : index
      %c0_11 = arith.constant 0 : index
      %12 = vector.load %arg3[%c0_10, %c0_11] : memref<128x128xbf16, #tpu.memory_space<vmem>>, vector<128x128xbf16>
      %cst_12 = arith.constant dense<0.000000e+00> : vector<2x128xf32>
      %13 = tpu.matmul %11, %12, %cst_12 {dimension_numbers = #tpu.dot_dimension_numbers<[1], [0], [0], [1], [0, 0, 1, 1], [], []>} : vector<2x128xbf16>, vector<128x128xbf16>, vector<2x128xf32> -> vector<2x128xf32>
      %c0_13 = arith.constant 0 : index
      %c0_14 = arith.constant 0 : index
      %14 = vector.load %arg4[%c0_13, %c0_14] : memref<1x128xf32, #tpu.memory_space<vmem>>, vector<1x128xf32>
      %15 = vector.broadcast %14 : vector<1x128xf32> to vector<2x128xf32>
      %16 = arith.addf %13, %15 : vector<2x128xf32>
      %cst_15 = arith.constant 0.000000e+00 : f32
      %17 = vector.broadcast %cst_15 : f32 to vector<2x128xf32>
      %18 = arith.maximumf %16, %17 : vector<2x128xf32>
      %19 = arith.truncf %18 : vector<2x128xf32> to vector<2x128xbf16>
      %c0_16 = arith.constant 0 : index
      %c0_17 = arith.constant 0 : index
      %20 = vector.load %arg5[%c0_16, %c0_17] : memref<128x128xbf16, #tpu.memory_space<vmem>>, vector<128x128xbf16>
      %cst_18 = arith.constant dense<0.000000e+00> : vector<2x128xf32>
      %21 = tpu.matmul %19, %20, %cst_18 {dimension_numbers = #tpu.dot_dimension_numbers<[1], [0], [0], [1], [0, 0, 1, 1], [], []>} : vector<2x128xbf16>, vector<128x128xbf16>, vector<2x128xf32> -> vector<2x128xf32>
      %c0_19 = arith.constant 0 : index
      %c0_20 = arith.constant 0 : index
      %22 = vector.load %arg6[%c0_19, %c0_20] : memref<1x128xf32, #tpu.memory_space<vmem>>, vector<1x128xf32>
      %23 = vector.broadcast %22 : vector<1x128xf32> to vector<2x128xf32>
      %24 = arith.addf %21, %23 : vector<2x128xf32>
      %cst_21 = arith.constant 0.000000e+00 : f32
      %25 = vector.broadcast %cst_21 : f32 to vector<2x128xf32>
      %26 = arith.maximumf %24, %25 : vector<2x128xf32>
      %27 = arith.truncf %26 : vector<2x128xf32> to vector<2x128xbf16>
      %c0_22 = arith.constant 0 : index
      %c0_23 = arith.constant 0 : index
      %28 = vector.load %arg7[%c0_22, %c0_23] : memref<128x128xbf16, #tpu.memory_space<vmem>>, vector<128x128xbf16>
      %cst_24 = arith.constant dense<0.000000e+00> : vector<2x128xf32>
      %29 = tpu.matmul %27, %28, %cst_24 {dimension_numbers = #tpu.dot_dimension_numbers<[1], [0], [0], [1], [0, 0, 1, 1], [], []>} : vector<2x128xbf16>, vector<128x128xbf16>, vector<2x128xf32> -> vector<2x128xf32>
      %c0_25 = arith.constant 0 : index
      %c0_26 = arith.constant 0 : index
      %30 = vector.load %arg8[%c0_25, %c0_26] : memref<1x128xf32, #tpu.memory_space<vmem>>, vector<1x128xf32>
      %31 = vector.broadcast %30 : vector<1x128xf32> to vector<2x128xf32>
      %32 = arith.addf %29, %31 : vector<2x128xf32>
      %cst_27 = arith.constant 0.000000e+00 : f32
      %33 = vector.broadcast %cst_27 : f32 to vector<2x128xf32>
      %34 = arith.maximumf %32, %33 : vector<2x128xf32>
      %35 = arith.truncf %34 : vector<2x128xf32> to vector<2x128xbf16>
      %c0_28 = arith.constant 0 : index
      %c0_29 = arith.constant 0 : index
      %36 = vector.load %arg12[%c0_28, %c0_29] : memref<2x128xbf16, #tpu.memory_space<vmem>>, vector<2x128xbf16>
      tpu.vector_store %arg12[%c0_28, %c0_29], %35 {strides = array<i32>} : memref<2x128xbf16, #tpu.memory_space<vmem>>, vector<2x128xbf16>,
    } else {
    }
    %c0 = arith.constant 0 : index
    %c0_1 = arith.constant 0 : index
    %3 = vector.load %arg12[%c0, %c0_1] : memref<2x128xbf16, #tpu.memory_space<vmem>>, vector<2x128xbf16>
    %c0_2 = arith.constant 0 : index
    %c0_3 = arith.constant 0 : index
    %4 = vector.load %arg9[%c0_2, %c0_3] : memref<128x128xbf16, #tpu.memory_space<vmem>>, vector<128x128xbf16>
    %cst = arith.constant dense<0.000000e+00> : vector<2x128xf32>
    %5 = tpu.matmul %3, %4, %cst {dimension_numbers = #tpu.dot_dimension_numbers<[1], [0], [0], [1], [0, 0, 1, 1], [], []>} : vector<2x128xbf16>, vector<128x128xbf16>, vector<2x128xf32> -> vector<2x128xf32>
    %c0_4 = arith.constant 0 : index
    %c0_5 = arith.constant 0 : index
    %6 = vector.load %arg10[%c0_4, %c0_5] : memref<1x128xf32, #tpu.memory_space<vmem>>, vector<1x128xf32>
    %7 = vector.broadcast %6 : vector<1x128xf32> to vector<2x128xf32>
    %8 = arith.addf %5, %7 : vector<2x128xf32>
    %c0_6 = arith.constant 0 : index
    %c0_7 = arith.constant 0 : index
    %9 = vector.load %arg11[%c0_6, %c0_7] : memref<2x128xf32, #tpu.memory_space<vmem>>, vector<2x128xf32>
    tpu.vector_store %arg11[%c0_6, %c0_7], %8 {strides = array<i32>} : memref<2x128xf32, #tpu.memory_space<vmem>>, vector<2x128xf32>,
    return
  }
  func.func @transform_0(%arg0: i32, %arg1: i32) -> (i32, i32) {
    %c0_i32 = arith.constant 0 : i32
    %c0_i32_0 = arith.constant 0 : i32
    return %arg0, %c0_i32 : i32, i32
  }
  func.func @transform_1(%arg0: i32, %arg1: i32) -> (i32, i32) {
    %c0_i32 = arith.constant 0 : i32
    %c0_i32_0 = arith.constant 0 : i32
    %c0_i32_1 = arith.constant 0 : i32
    return %c0_i32, %c0_i32_0 : i32, i32
  }
  func.func @transform_2(%arg0: i32, %arg1: i32) -> (i32, i32) {
    %c0_i32 = arith.constant 0 : i32
    %c0_i32_0 = arith.constant 0 : i32
    %c0_i32_1 = arith.constant 0 : i32
    return %c0_i32, %c0_i32_0 : i32, i32
  }
  func.func @transform_3(%arg0: i32, %arg1: i32) -> (i32, i32) {
    %c0_i32 = arith.constant 0 : i32
    %c0_i32_0 = arith.constant 0 : i32
    %c0_i32_1 = arith.constant 0 : i32
    return %c0_i32, %c0_i32_0 : i32, i32
  }
  func.func @transform_4(%arg0: i32, %arg1: i32) -> (i32, i32) {
    %c0_i32 = arith.constant 0 : i32
    %c0_i32_0 = arith.constant 0 : i32
    %c0_i32_1 = arith.constant 0 : i32
    return %c0_i32, %c0_i32_0 : i32, i32
  }
  func.func @transform_5(%arg0: i32, %arg1: i32) -> (i32, i32) {
    %c0_i32 = arith.constant 0 : i32
    %c0_i32_0 = arith.constant 0 : i32
    %c0_i32_1 = arith.constant 0 : i32
    return %c0_i32, %c0_i32_0 : i32, i32
  }
  func.func @transform_6(%arg0: i32, %arg1: i32) -> (i32, i32) {
    %c0_i32 = arith.constant 0 : i32
    %c0_i32_0 = arith.constant 0 : i32
    %c0_i32_1 = arith.constant 0 : i32
    return %c0_i32, %c0_i32_0 : i32, i32
  }
  func.func @transform_7(%arg0: i32, %arg1: i32) -> (i32, i32) {
    %c0_i32 = arith.constant 0 : i32
    %c0_i32_0 = arith.constant 0 : i32
    return %c0_i32, %arg1 : i32, i32
  }
  func.func @transform_8(%arg0: i32, %arg1: i32) -> (i32, i32) {
    %c0_i32 = arith.constant 0 : i32
    %c0_i32_0 = arith.constant 0 : i32
    return %c0_i32, %arg1 : i32, i32
  }
  func.func @transform_9(%arg0: i32, %arg1: i32) -> (i32, i32) {
    %c0_i32 = arith.constant 0 : i32
    return %arg0, %arg1 : i32, i32
  }
}

module attributes {stable_mosaic.version = 11 : i64} {
  func.func @mlp_decoder_kernel(%arg0: i32, %arg1: i32, %arg2: memref<2x128xf32, #tpu.memory_space<vmem>>, %arg3: memref<128x128xbf16, #tpu.memory_space<vmem>>, %arg4: memref<1x128xf32, #tpu.memory_space<vmem>>, %arg5: memref<128x128xbf16, #tpu.memory_space<vmem>>, %arg6: memref<1x128xf32, #tpu.memory_space<vmem>>, %arg7: memref<128x128xbf16, #tpu.memory_space<vmem>>, %arg8: memref<1x128xf32, #tpu.memory_space<vmem>>, %arg9: memref<128x128xbf16, #tpu.memory_space<vmem>>, %arg10: memref<1x128xf32, #tpu.memory_space<vmem>>, %arg11: memref<2x128xf32, #tpu.memory_space<vmem>>, %arg12: memref<2x128xbf16, #tpu.memory_space<vmem>>) attributes {dimension_semantics = [#tpu.dimension_semantics<parallel>, #tpu.dimension_semantics<arbitrary>], iteration_bounds = array<i64: 1, 1>, scalar_prefetch = 0 : i64, scratch_operands = 1 : i64, tpu.core_type = #tpu.core_type<tc>, window_params = [{transform_indices = @transform_0, window_bounds = array<i64: 2, 128>}, {pipeline_mode = #tpu.pipeline_mode<synchronous>, transform_indices = @transform_1, window_bounds = array<i64: 128, 128>}, {pipeline_mode = #tpu.pipeline_mode<synchronous>, transform_indices = @transform_2, window_bounds = array<i64: 1, 128>}, {pipeline_mode = #tpu.pipeline_mode<synchronous>, transform_indices = @transform_3, window_bounds = array<i64: 128, 128>}, {pipeline_mode = #tpu.pipeline_mode<synchronous>, transform_indices = @transform_4, window_bounds = array<i64: 1, 128>}, {pipeline_mode = #tpu.pipeline_mode<synchronous>, transform_indices = @transform_5, window_bounds = array<i64: 128, 128>}, {pipeline_mode = #tpu.pipeline_mode<synchronous>, transform_indices = @transform_6, window_bounds = array<i64: 1, 128>}, {transform_indices = @transform_7, window_bounds = array<i64: 128, 128>}, {transform_indices = @transform_8, window_bounds = array<i64: 1, 128>}, {transform_indices = @transform_9, window_bounds = array<i64: 2, 128>}]} {
    %c0_i32 = arith.constant 0 : i32
    %0 = arith.cmpi eq, %arg1, %c0_i32 : i32
    %1 = arith.extui %0 : i1 to i32
    %c0_i32_0 = arith.constant 0 : i32
    %2 = arith.cmpi ne, %1, %c0_i32_0 : i32
    scf.if %2 {
      %c0_8 = arith.constant 0 : index
      %c0_9 = arith.constant 0 : index
      %10 = vector.load %arg2[%c0_8, %c0_9] : memref<2x128xf32, #tpu.memory_space<vmem>>, vector<2x128xf32>
      %11 = arith.truncf %10 : vector<2x128xf32> to vector<2x128xbf16>
      %c0_10 = arith.constant 0 : index
      %c0_11 = arith.constant 0 : index
      %12 = vector.load %arg3[%c0_10, %c0_11] : memref<128x128xbf16, #tpu.memory_space<vmem>>, vector<128x128xbf16>
      %cst_12 = arith.constant dense<0.000000e+00> : vector<2x128xf32>
      %13 = tpu.matmul %11, %12, %cst_12 {dimension_numbers = #tpu.dot_dimension_numbers<[1], [0], [0], [1], [0, 0, 1, 1], [], []>} : vector<2x128xbf16>, vector<128x128xbf16>, vector<2x128xf32> -> vector<2x128xf32>
      %c0_13 = arith.constant 0 : index
      %c0_14 = arith.constant 0 : index
      %14 = vector.load %arg4[%c0_13, %c0_14] : memref<1x128xf32, #tpu.memory_space<vmem>>, vector<1x128xf32>
      %15 = vector.broadcast %14 : vector<1x128xf32> to vector<2x128xf32>
      %16 = arith.addf %13, %15 : vector<2x128xf32>
      %cst_15 = arith.constant 0.000000e+00 : f32
      %17 = vector.broadcast %cst_15 : f32 to vector<2x128xf32>
      %18 = arith.maximumf %16, %17 : vector<2x128xf32>
      %19 = arith.truncf %18 : vector<2x128xf32> to vector<2x128xbf16>
      %c0_16 = arith.constant 0 : index
      %c0_17 = arith.constant 0 : index
      %20 = vector.load %arg5[%c0_16, %c0_17] : memref<128x128xbf16, #tpu.memory_space<vmem>>, vector<128x128xbf16>
      %cst_18 = arith.constant dense<0.000000e+00> : vector<2x128xf32>
      %21 = tpu.matmul %19, %20, %cst_18 {dimension_numbers = #tpu.dot_dimension_numbers<[1], [0], [0], [1], [0, 0, 1, 1], [], []>} : vector<2x128xbf16>, vector<128x128xbf16>, vector<2x128xf32> -> vector<2x128xf32>
      %c0_19 = arith.constant 0 : index
      %c0_20 = arith.constant 0 : index
      %22 = vector.load %arg6[%c0_19, %c0_20] : memref<1x128xf32, #tpu.memory_space<vmem>>, vector<1x128xf32>
      %23 = vector.broadcast %22 : vector<1x128xf32> to vector<2x128xf32>
      %24 = arith.addf %21, %23 : vector<2x128xf32>
      %cst_21 = arith.constant 0.000000e+00 : f32
      %25 = vector.broadcast %cst_21 : f32 to vector<2x128xf32>
      %26 = arith.maximumf %24, %25 : vector<2x128xf32>
      %27 = arith.truncf %26 : vector<2x128xf32> to vector<2x128xbf16>
      %c0_22 = arith.constant 0 : index
      %c0_23 = arith.constant 0 : index
      %28 = vector.load %arg7[%c0_22, %c0_23] : memref<128x128xbf16, #tpu.memory_space<vmem>>, vector<128x128xbf16>
      %cst_24 = arith.constant dense<0.000000e+00> : vector<2x128xf32>
      %29 = tpu.matmul %27, %28, %cst_24 {dimension_numbers = #tpu.dot_dimension_numbers<[1], [0], [0], [1], [0, 0, 1, 1], [], []>} : vector<2x128xbf16>, vector<128x128xbf16>, vector<2x128xf32> -> vector<2x128xf32>
      %c0_25 = arith.constant 0 : index
      %c0_26 = arith.constant 0 : index
      %30 = vector.load %arg8[%c0_25, %c0_26] : memref<1x128xf32, #tpu.memory_space<vmem>>, vector<1x128xf32>
      %31 = vector.broadcast %30 : vector<1x128xf32> to vector<2x128xf32>
      %32 = arith.addf %29, %31 : vector<2x128xf32>
      %cst_27 = arith.constant 0.000000e+00 : f32
      %33 = vector.broadcast %cst_27 : f32 to vector<2x128xf32>
      %34 = arith.maximumf %32, %33 : vector<2x128xf32>
      %35 = arith.truncf %34 : vector<2x128xf32> to vector<2x128xbf16>
      %c0_28 = arith.constant 0 : index
      %c0_29 = arith.constant 0 : index
      %36 = vector.load %arg12[%c0_28, %c0_29] : memref<2x128xbf16, #tpu.memory_space<vmem>>, vector<2x128xbf16>
      tpu.vector_store %arg12[%c0_28, %c0_29], %35 {strides = array<i32>} : memref<2x128xbf16, #tpu.memory_space<vmem>>, vector<2x128xbf16>,
    } else {
    }
    %c0 = arith.constant 0 : index
    %c0_1 = arith.constant 0 : index
    %3 = vector.load %arg12[%c0, %c0_1] : memref<2x128xbf16, #tpu.memory_space<vmem>>, vector<2x128xbf16>
    %c0_2 = arith.constant 0 : index
    %c0_3 = arith.constant 0 : index
    %4 = vector.load %arg9[%c0_2, %c0_3] : memref<128x128xbf16, #tpu.memory_space<vmem>>, vector<128x128xbf16>
    %cst = arith.constant dense<0.000000e+00> : vector<2x128xf32>
    %5 = tpu.matmul %3, %4, %cst {dimension_numbers = #tpu.dot_dimension_numbers<[1], [0], [0], [1], [0, 0, 1, 1], [], []>} : vector<2x128xbf16>, vector<128x128xbf16>, vector<2x128xf32> -> vector<2x128xf32>
    %c0_4 = arith.constant 0 : index
    %c0_5 = arith.constant 0 : index
    %6 = vector.load %arg10[%c0_4, %c0_5] : memref<1x128xf32, #tpu.memory_space<vmem>>, vector<1x128xf32>
    %7 = vector.broadcast %6 : vector<1x128xf32> to vector<2x128xf32>
    %8 = arith.addf %5, %7 : vector<2x128xf32>
    %c0_6 = arith.constant 0 : index
    %c0_7 = arith.constant 0 : index
    %9 = vector.load %arg11[%c0_6, %c0_7] : memref<2x128xf32, #tpu.memory_space<vmem>>, vector<2x128xf32>
    tpu.vector_store %arg11[%c0_6, %c0_7], %8 {strides = array<i32>} : memref<2x128xf32, #tpu.memory_space<vmem>>, vector<2x128xf32>,
    return
  }
  func.func @transform_0(%arg0: i32, %arg1: i32) -> (i32, i32) {
    %c0_i32 = arith.constant 0 : i32
    %c0_i32_0 = arith.constant 0 : i32
    return %arg0, %c0_i32 : i32, i32
  }
  func.func @transform_1(%arg0: i32, %arg1: i32) -> (i32, i32) {
    %c0_i32 = arith.constant 0 : i32
    %c0_i32_0 = arith.constant 0 : i32
    %c0_i32_1 = arith.constant 0 : i32
    return %c0_i32, %c0_i32_0 : i32, i32
  }
  func.func @transform_2(%arg0: i32, %arg1: i32) -> (i32, i32) {
    %c0_i32 = arith.constant 0 : i32
    %c0_i32_0 = arith.constant 0 : i32
    %c0_i32_1 = arith.constant 0 : i32
    return %c0_i32, %c0_i32_0 : i32, i32
  }
  func.func @transform_3(%arg0: i32, %arg1: i32) -> (i32, i32) {
    %c0_i32 = arith.constant 0 : i32
    %c0_i32_0 = arith.constant 0 : i32
    %c0_i32_1 = arith.constant 0 : i32
    return %c0_i32, %c0_i32_0 : i32, i32
  }
  func.func @transform_4(%arg0: i32, %arg1: i32) -> (i32, i32) {
    %c0_i32 = arith.constant 0 : i32
    %c0_i32_0 = arith.constant 0 : i32
    %c0_i32_1 = arith.constant 0 : i32
    return %c0_i32, %c0_i32_0 : i32, i32
  }
  func.func @transform_5(%arg0: i32, %arg1: i32) -> (i32, i32) {
    %c0_i32 = arith.constant 0 : i32
    %c0_i32_0 = arith.constant 0 : i32
    %c0_i32_1 = arith.constant 0 : i32
    return %c0_i32, %c0_i32_0 : i32, i32
  }
  func.func @transform_6(%arg0: i32, %arg1: i32) -> (i32, i32) {
    %c0_i32 = arith.constant 0 : i32
    %c0_i32_0 = arith.constant 0 : i32
    %c0_i32_1 = arith.constant 0 : i32
    return %c0_i32, %c0_i32_0 : i32, i32
  }
  func.func @transform_7(%arg0: i32, %arg1: i32) -> (i32, i32) {
    %c0_i32 = arith.constant 0 : i32
    %c0_i32_0 = arith.constant 0 : i32
    return %c0_i32, %arg1 : i32, i32
  }
  func.func @transform_8(%arg0: i32, %arg1: i32) -> (i32, i32) {
    %c0_i32 = arith.constant 0 : i32
    %c0_i32_0 = arith.constant 0 : i32
    return %c0_i32, %arg1 : i32, i32
  }
  func.func @transform_9(%arg0: i32, %arg1: i32) -> (i32, i32) {
    %c0_i32 = arith.constant 0 : i32
    return %arg0, %arg1 : i32, i32
  }
}

</mosaic_0001>

<llo_original>
// kernel: _mlp_decoder_forward_impl.1
$region0: #{_mlp_decoder_forward_impl.1}
  #allocation0 [shape = 'u32[]', space=smem, size = 0x4, offset = 0x4, fixed_abs, tag = 'smem constant byte address 0x4 - core index']
  #allocation1 [shape = 'u32[144,128]{1,0:T(1,128)}', space=vmem, size = 0x12000, scoped, tag = 'internal scratch']
  #allocation2 [shape = 'bf16[2,128]{1,0:T(2,128)(2,1)}', space=vmem, size = 0x200, scoped, tag = 'scratch operand']
  %s0 = inlined_call_operand.vmem [shape: f32[2,128], index: 0, kind: input, shape index: {}]
  %s1 = inlined_call_operand.vmem [shape: bf16[128,128], index: 1, kind: input, shape index: {}]
  %s2 = inlined_call_operand.vmem [shape: f32[1,128], index: 2, kind: input, shape index: {}]
  %s3 = inlined_call_operand.vmem [shape: bf16[128,128], index: 3, kind: input, shape index: {}]
  %s4 = inlined_call_operand.vmem [shape: f32[1,128], index: 4, kind: input, shape index: {}]
  %s5 = inlined_call_operand.vmem [shape: bf16[128,128], index: 5, kind: input, shape index: {}]
  %s6 = inlined_call_operand.vmem [shape: f32[1,128], index: 6, kind: input, shape index: {}]
  %s7 = inlined_call_operand.vmem [shape: bf16[128,128], index: 7, kind: input, shape index: {}]
  %s8 = inlined_call_operand.vmem [shape: f32[1,128], index: 8, kind: input, shape index: {}]
  %s9 = inlined_call_operand.vmem [shape: f32[2,128], index: 9, kind: output, shape index: {}]
  %s10 = sld [smem:[#allocation0]]
  $region50: #{_mlp_decoder_forward_impl.1} parent=0
    _
  %s12 = ssub.s32 1, %s10
  %s13 = scalar_select 0, %s12, %s10
  // Predicated region
  $region2: #{_mlp_decoder_forward_impl.1} parent=0 // pred_check
    _
  $region3: #{_mlp_decoder_forward_impl.1} parent=0 // pred_check_branch
    %15 = sbr.rel (0) target = $region5
  $region4: #{_mlp_decoder_forward_impl.1} parent=0 // pred_region
    _
  $region5: #{_mlp_decoder_forward_impl.1} parent=0 // pred_fallthru
    _
  // Predicated region
  $region6: #{_mlp_decoder_forward_impl.1} parent=0 // pred_check
    _
  $region7: #{_mlp_decoder_forward_impl.1} parent=0 // pred_check_branch
    %17 = sbr.rel (0) target = $region9
  $region8: #{_mlp_decoder_forward_impl.1} parent=0 // pred_region
    _
  $region9: #{_mlp_decoder_forward_impl.1} parent=0 // pred_fallthru
    _
  // Predicated region
  $region10: #{_mlp_decoder_forward_impl.1} parent=0 // pred_check
    _
  $region11: #{_mlp_decoder_forward_impl.1} parent=0 // pred_check_branch
    %19 = sbr.rel (0) target = $region13
  $region12: #{_mlp_decoder_forward_impl.1} parent=0 // pred_region
    _
  $region13: #{_mlp_decoder_forward_impl.1} parent=0 // pred_fallthru
    _
  // Predicated region
  $region14: #{_mlp_decoder_forward_impl.1} parent=0 // pred_check
    _
  $region15: #{_mlp_decoder_forward_impl.1} parent=0 // pred_check_branch
    %21 = sbr.rel (0) target = $region17
  $region16: #{_mlp_decoder_forward_impl.1} parent=0 // pred_region
    _
  $region17: #{_mlp_decoder_forward_impl.1} parent=0 // pred_fallthru
    _
  // Predicated region
  $region18: #{_mlp_decoder_forward_impl.1} parent=0 // pred_check
    _
  $region19: #{_mlp_decoder_forward_impl.1} parent=0 // pred_check_branch
    %23 = sbr.rel (0) target = $region21
  $region20: #{_mlp_decoder_forward_impl.1} parent=0 // pred_region
    _
  $region21: #{_mlp_decoder_forward_impl.1} parent=0 // pred_fallthru
    _
  // Predicated region
  $region22: #{_mlp_decoder_forward_impl.1} parent=0 // pred_check
    _
  $region23: #{_mlp_decoder_forward_impl.1} parent=0 // pred_check_branch
    %25 = sbr.rel (0) target = $region25
  $region24: #{_mlp_decoder_forward_impl.1} parent=0 // pred_region
    _
  $region25: #{_mlp_decoder_forward_impl.1} parent=0 // pred_fallthru
    _
  // Predicated region
  $region26: #{_mlp_decoder_forward_impl.1} parent=0 // pred_check
    _
  $region27: #{_mlp_decoder_forward_impl.1} parent=0 // pred_check_branch
    %27 = sbr.rel (0) target = $region29
  $region28: #{_mlp_decoder_forward_impl.1} parent=0 // pred_region
    _
  $region29: #{_mlp_decoder_forward_impl.1} parent=0 // pred_fallthru
    _
  // Predicated region
  $region30: #{_mlp_decoder_forward_impl.1} parent=0 // pred_check
    _
  $region31: #{_mlp_decoder_forward_impl.1} parent=0 // pred_check_branch
    %29 = sbr.rel (0) target = $region33
  $region32: #{_mlp_decoder_forward_impl.1} parent=0 // pred_region
    _
  $region33: #{_mlp_decoder_forward_impl.1} parent=0 // pred_fallthru
    _
  // Predicated region
  $region34: #{_mlp_decoder_forward_impl.1} parent=0 // pred_check
    _
  $region35: #{_mlp_decoder_forward_impl.1} parent=0 // pred_check_branch
    %31 = sbr.rel (0) target = $region37
  $region36: #{_mlp_decoder_forward_impl.1} parent=0 // pred_region
    _
  $region37: #{_mlp_decoder_forward_impl.1} parent=0 // pred_fallthru
    _
  %p33 = scmp.eq.s32.totalorder 0, 0
  // Predicated region
  $region38: #{_mlp_decoder_forward_impl.1} parent=0 // pred_check
    %p34 = pneg %p33
  $region39: #{_mlp_decoder_forward_impl.1} parent=0 // pred_check_branch
    %36 = sbr.rel (%p34) target = $region41
  $region40: #{_mlp_decoder_forward_impl.1} parent=0 // pred_region
    %v37 = vld [vmem:[%s0] sm:$0x3]
    %v38 = vpack.c.bf16 %v37, %v37
    %v39 = vld [vmem:[%s1] sm:$0xf]
    %v40 = vld [vmem:[%s1 + $0x4] sm:$0xf]
    %v41 = vld [vmem:[%s1 + $0x8] sm:$0xf]
    %v42 = vld [vmem:[%s1 + $0xc] sm:$0xf]
    %v43 = vld [vmem:[%s1 + $0x10] sm:$0xf]
    %v44 = vld [vmem:[%s1 + $0x14] sm:$0xf]
    %v45 = vld [vmem:[%s1 + $0x18] sm:$0xf]
    %v46 = vld [vmem:[%s1 + $0x1c] sm:$0xf]
    %v47 = vld [vmem:[%s1 + $0x20] sm:$0xf]
    %v48 = vld [vmem:[%s1 + $0x24] sm:$0xf]
    %v49 = vld [vmem:[%s1 + $0x28] sm:$0xf]
    %v50 = vld [vmem:[%s1 + $0x2c] sm:$0xf]
    %v51 = vld [vmem:[%s1 + $0x30] sm:$0xf]
    %v52 = vld [vmem:[%s1 + $0x34] sm:$0xf]
    %v53 = vld [vmem:[%s1 + $0x38] sm:$0xf]
    %v54 = vld [vmem:[%s1 + $0x3c] sm:$0xf]
    %v55 = vld [vmem:[%s2] sm:$0x1]
    %v57 = vlaneseq
    %v58 = vshrl.u32 %v57, 7
    %v59 = vsub.s32 0, %v58
    %v60 = vrot.slane %v55, %v59
    %v78 = vunpack.c.l.b16 %v39
    %v79 = vunpack.c.l.b16 %v40
    %v80 = vunpack.c.l.b16 %v41
    %v81 = vunpack.c.l.b16 %v42
    %v82 = vunpack.c.l.b16 %v43
    %v83 = vunpack.c.l.b16 %v44
    %v84 = vunpack.c.l.b16 %v45
    %v85 = vunpack.c.l.b16 %v46
    %v86 = vunpack.c.l.b16 %v47
    %v87 = vunpack.c.l.b16 %v48
    %v88 = vunpack.c.l.b16 %v49
    %v89 = vunpack.c.l.b16 %v50
    %v90 = vunpack.c.l.b16 %v51
    %v91 = vunpack.c.l.b16 %v52
    %v92 = vunpack.c.l.b16 %v53
    %v93 = vunpack.c.l.b16 %v54
    %v94 = vpack.c.b16 %v79, %v78
    %v95 = vpack.c.b16 %v81, %v80
    %v96 = vpack.c.b16 %v83, %v82
    %v97 = vpack.c.b16 %v85, %v84
    %v98 = vpack.c.b16 %v87, %v86
    %v99 = vpack.c.b16 %v89, %v88
    %v100 = vpack.c.b16 %v91, %v90
    %v101 = vpack.c.b16 %v93, %v92
    %110 = vmatprep.subr.bf16.mxu0 0
    %111 = vmatpush1.bf16.msra.mxu0 %v94
    %112 = vmatprep.subr.bf16.mxu0 0
    %113 = vmatpush1.bf16.msra.mxu0 %v95
    %114 = vmatprep.subr.bf16.mxu0 0
    %115 = vmatpush1.bf16.msra.mxu0 %v96
    %116 = vmatprep.subr.bf16.mxu0 0
    %117 = vmatpush1.bf16.msra.mxu0 %v97
    %118 = vmatprep.subr.bf16.mxu0 0
    %119 = vmatpush1.bf16.msra.mxu0 %v98
    %120 = vmatprep.subr.bf16.mxu0 0
    %121 = vmatpush1.bf16.msra.mxu0 %v99
    %122 = vmatprep.subr.bf16.mxu0 0
    %123 = vmatpush1.bf16.msra.mxu0 %v100
    %124 = vmatprep.subr.bf16.mxu0 0
    %125 = vmatpush1.bf16.msra.mxu0 %v101
    %126 = vmatprep.subr.bf16.mxu0 0
    %127 = vmatpush1.bf16.msra.mxu0 0
    %128 = vmatprep.subr.bf16.mxu0 0
    %129 = vmatpush1.bf16.msra.mxu0 0
    %130 = vmatprep.subr.bf16.mxu0 0
    %131 = vmatpush1.bf16.msra.mxu0 0
    %132 = vmatprep.subr.bf16.mxu0 0
    %133 = vmatpush1.bf16.msra.mxu0 0
    %134 = vmatprep.subr.bf16.mxu0 0
    %135 = vmatpush1.bf16.msra.mxu0 0
    %136 = vmatprep.subr.bf16.mxu0 0
    %137 = vmatpush1.bf16.msra.mxu0 0
    %138 = vmatprep.subr.bf16.mxu0 0
    %139 = vmatpush1.bf16.msra.mxu0 0
    %140 = vmatprep.subr.bf16.mxu0 0
    %141 = vmatpush1.bf16.msra.mxu0 0
    %142 = vmatprep.mubr.bf16.mxu0 0
    %143 = vmatmul.mubr.bf16.gmra.mrb[0].mxu0 %v38
    %v144 = vpop.f32.mrb[0].mxu0
    %v145 = vadd.f32 %v60, %v144
    %v146 = vpop.f32.mrb[0].mxu0
    %v147 = vpop.f32.mrb[0].mxu0
    %v148 = vpop.f32.mrb[0].mxu0
    %149 = vdwg.mxu0
    %v150 = vmax.f32 %v145, 0.0
    %v151 = vpack.c.bf16 %v150, %v150
    %v152 = vld [vmem:[%s3] sm:$0xf]
    %v153 = vld [vmem:[%s3 + $0x4] sm:$0xf]
    %v154 = vld [vmem:[%s3 + $0x8] sm:$0xf]
    %v155 = vld [vmem:[%s3 + $0xc] sm:$0xf]
    %v156 = vld [vmem:[%s3 + $0x10] sm:$0xf]
    %v157 = vld [vmem:[%s3 + $0x14] sm:$0xf]
    %v158 = vld [vmem:[%s3 + $0x18] sm:$0xf]
    %v159 = vld [vmem:[%s3 + $0x1c] sm:$0xf]
    %v160 = vld [vmem:[%s3 + $0x20] sm:$0xf]
    %v161 = vld [vmem:[%s3 + $0x24] sm:$0xf]
    %v162 = vld [vmem:[%s3 + $0x28] sm:$0xf]
    %v163 = vld [vmem:[%s3 + $0x2c] sm:$0xf]
    %v164 = vld [vmem:[%s3 + $0x30] sm:$0xf]
    %v165 = vld [vmem:[%s3 + $0x34] sm:$0xf]
    %v166 = vld [vmem:[%s3 + $0x38] sm:$0xf]
    %v167 = vld [vmem:[%s3 + $0x3c] sm:$0xf]
    %v168 = vld [vmem:[%s4] sm:$0x1]
    %v170 = vlaneseq
    %v171 = vshrl.u32 %v170, 7
    %v172 = vsub.s32 0, %v171
    %v173 = vrot.slane %v168, %v172
    %v191 = vunpack.c.l.b16 %v152
    %v192 = vunpack.c.l.b16 %v153
    %v193 = vunpack.c.l.b16 %v154
    %v194 = vunpack.c.l.b16 %v155
    %v195 = vunpack.c.l.b16 %v156
    %v196 = vunpack.c.l.b16 %v157
    %v197 = vunpack.c.l.b16 %v158
    %v198 = vunpack.c.l.b16 %v159
    %v199 = vunpack.c.l.b16 %v160
    %v200 = vunpack.c.l.b16 %v161
    %v201 = vunpack.c.l.b16 %v162
    %v202 = vunpack.c.l.b16 %v163
    %v203 = vunpack.c.l.b16 %v164
    %v204 = vunpack.c.l.b16 %v165
    %v205 = vunpack.c.l.b16 %v166
    %v206 = vunpack.c.l.b16 %v167
    %v207 = vpack.c.b16 %v192, %v191
    %v208 = vpack.c.b16 %v194, %v193
    %v209 = vpack.c.b16 %v196, %v195
    %v210 = vpack.c.b16 %v198, %v197
    %v211 = vpack.c.b16 %v200, %v199
    %v212 = vpack.c.b16 %v202, %v201
    %v213 = vpack.c.b16 %v204, %v203
    %v214 = vpack.c.b16 %v206, %v205
    %223 = vmatprep.subr.bf16.mxu0 0
    %224 = vmatpush1.bf16.msra.mxu0 %v207
    %225 = vmatprep.subr.bf16.mxu0 0
    %226 = vmatpush1.bf16.msra.mxu0 %v208
    %227 = vmatprep.subr.bf16.mxu0 0
    %228 = vmatpush1.bf16.msra.mxu0 %v209
    %229 = vmatprep.subr.bf16.mxu0 0
    %230 = vmatpush1.bf16.msra.mxu0 %v210
    %231 = vmatprep.subr.bf16.mxu0 0
    %232 = vmatpush1.bf16.msra.mxu0 %v211
    %233 = vmatprep.subr.bf16.mxu0 0
    %234 = vmatpush1.bf16.msra.mxu0 %v212
    %235 = vmatprep.subr.bf16.mxu0 0
    %236 = vmatpush1.bf16.msra.mxu0 %v213
    %237 = vmatprep.subr.bf16.mxu0 0
    %238 = vmatpush1.bf16.msra.mxu0 %v214
    %239 = vmatprep.subr.bf16.mxu0 0
    %240 = vmatpush1.bf16.msra.mxu0 0
    %241 = vmatprep.subr.bf16.mxu0 0
    %242 = vmatpush1.bf16.msra.mxu0 0
    %243 = vmatprep.subr.bf16.mxu0 0
    %244 = vmatpush1.bf16.msra.mxu0 0
    %245 = vmatprep.subr.bf16.mxu0 0
    %246 = vmatpush1.bf16.msra.mxu0 0
    %247 = vmatprep.subr.bf16.mxu0 0
    %248 = vmatpush1.bf16.msra.mxu0 0
    %249 = vmatprep.subr.bf16.mxu0 0
    %250 = vmatpush1.bf16.msra.mxu0 0
    %251 = vmatprep.subr.bf16.mxu0 0
    %252 = vmatpush1.bf16.msra.mxu0 0
    %253 = vmatprep.subr.bf16.mxu0 0
    %254 = vmatpush1.bf16.msra.mxu0 0
    %255 = vmatprep.mubr.bf16.mxu0 0
    %256 = vmatmul.mubr.bf16.gmra.mrb[0].mxu0 %v151
    %v257 = vpop.f32.mrb[0].mxu0
    %v258 = vadd.f32 %v173, %v257
    %v259 = vpop.f32.mrb[0].mxu0
    %v260 = vpop.f32.mrb[0].mxu0
    %v261 = vpop.f32.mrb[0].mxu0
    %262 = vdwg.mxu0
    %v263 = vmax.f32 %v258, 0.0
    %v264 = vpack.c.bf16 %v263, %v263
    %v265 = vld [vmem:[%s5] sm:$0xf]
    %v266 = vld [vmem:[%s5 + $0x4] sm:$0xf]
    %v267 = vld [vmem:[%s5 + $0x8] sm:$0xf]
    %v268 = vld [vmem:[%s5 + $0xc] sm:$0xf]
    %v269 = vld [vmem:[%s5 + $0x10] sm:$0xf]
    %v270 = vld [vmem:[%s5 + $0x14] sm:$0xf]
    %v271 = vld [vmem:[%s5 + $0x18] sm:$0xf]
    %v272 = vld [vmem:[%s5 + $0x1c] sm:$0xf]
    %v273 = vld [vmem:[%s5 + $0x20] sm:$0xf]
    %v274 = vld [vmem:[%s5 + $0x24] sm:$0xf]
    %v275 = vld [vmem:[%s5 + $0x28] sm:$0xf]
    %v276 = vld [vmem:[%s5 + $0x2c] sm:$0xf]
    %v277 = vld [vmem:[%s5 + $0x30] sm:$0xf]
    %v278 = vld [vmem:[%s5 + $0x34] sm:$0xf]
    %v279 = vld [vmem:[%s5 + $0x38] sm:$0xf]
    %v280 = vld [vmem:[%s5 + $0x3c] sm:$0xf]
    %v281 = vld [vmem:[%s6] sm:$0x1]
    %v283 = vlaneseq
    %v284 = vshrl.u32 %v283, 7
    %v285 = vsub.s32 0, %v284
    %v286 = vrot.slane %v281, %v285
    %v304 = vunpack.c.l.b16 %v265
    %v305 = vunpack.c.l.b16 %v266
    %v306 = vunpack.c.l.b16 %v267
    %v307 = vunpack.c.l.b16 %v268
    %v308 = vunpack.c.l.b16 %v269
    %v309 = vunpack.c.l.b16 %v270
    %v310 = vunpack.c.l.b16 %v271
    %v311 = vunpack.c.l.b16 %v272
    %v312 = vunpack.c.l.b16 %v273
    %v313 = vunpack.c.l.b16 %v274
    %v314 = vunpack.c.l.b16 %v275
    %v315 = vunpack.c.l.b16 %v276
    %v316 = vunpack.c.l.b16 %v277
    %v317 = vunpack.c.l.b16 %v278
    %v318 = vunpack.c.l.b16 %v279
    %v319 = vunpack.c.l.b16 %v280
    %v320 = vpack.c.b16 %v305, %v304
    %v321 = vpack.c.b16 %v307, %v306
    %v322 = vpack.c.b16 %v309, %v308
    %v323 = vpack.c.b16 %v311, %v310
    %v324 = vpack.c.b16 %v313, %v312
    %v325 = vpack.c.b16 %v315, %v314
    %v326 = vpack.c.b16 %v317, %v316
    %v327 = vpack.c.b16 %v319, %v318
    %336 = vmatprep.subr.bf16.mxu0 0
    %337 = vmatpush1.bf16.msra.mxu0 %v320
    %338 = vmatprep.subr.bf16.mxu0 0
    %339 = vmatpush1.bf16.msra.mxu0 %v321
    %340 = vmatprep.subr.bf16.mxu0 0
    %341 = vmatpush1.bf16.msra.mxu0 %v322
    %342 = vmatprep.subr.bf16.mxu0 0
    %343 = vmatpush1.bf16.msra.mxu0 %v323
    %344 = vmatprep.subr.bf16.mxu0 0
    %345 = vmatpush1.bf16.msra.mxu0 %v324
    %346 = vmatprep.subr.bf16.mxu0 0
    %347 = vmatpush1.bf16.msra.mxu0 %v325
    %348 = vmatprep.subr.bf16.mxu0 0
    %349 = vmatpush1.bf16.msra.mxu0 %v326
    %350 = vmatprep.subr.bf16.mxu0 0
    %351 = vmatpush1.bf16.msra.mxu0 %v327
    %352 = vmatprep.subr.bf16.mxu0 0
    %353 = vmatpush1.bf16.msra.mxu0 0
    %354 = vmatprep.subr.bf16.mxu0 0
    %355 = vmatpush1.bf16.msra.mxu0 0
    %356 = vmatprep.subr.bf16.mxu0 0
    %357 = vmatpush1.bf16.msra.mxu0 0
    %358 = vmatprep.subr.bf16.mxu0 0
    %359 = vmatpush1.bf16.msra.mxu0 0
    %360 = vmatprep.subr.bf16.mxu0 0
    %361 = vmatpush1.bf16.msra.mxu0 0
    %362 = vmatprep.subr.bf16.mxu0 0
    %363 = vmatpush1.bf16.msra.mxu0 0
    %364 = vmatprep.subr.bf16.mxu0 0
    %365 = vmatpush1.bf16.msra.mxu0 0
    %366 = vmatprep.subr.bf16.mxu0 0
    %367 = vmatpush1.bf16.msra.mxu0 0
    %368 = vmatprep.mubr.bf16.mxu0 0
    %369 = vmatmul.mubr.bf16.gmra.mrb[0].mxu0 %v264
    %v370 = vpop.f32.mrb[0].mxu0
    %v371 = vadd.f32 %v286, %v370
    %v372 = vpop.f32.mrb[0].mxu0
    %v373 = vpop.f32.mrb[0].mxu0
    %v374 = vpop.f32.mrb[0].mxu0
    %375 = vdwg.mxu0
    %v376 = vmax.f32 %v371, 0.0
    %v377 = vpack.c.bf16 %v376, %v376
    %378 = vst [vmem:[#allocation2] sm:$0x1] %v377
  $region41: #{_mlp_decoder_forward_impl.1} parent=0 // pred_fallthru
    _
  %v379 = vld [vmem:[#allocation2] sm:$0x1]
  %v380 = vld [vmem:[%s7] sm:$0xf]
  %v381 = vld [vmem:[%s7 + $0x4] sm:$0xf]
  %v382 = vld [vmem:[%s7 + $0x8] sm:$0xf]
  %v383 = vld [vmem:[%s7 + $0xc] sm:$0xf]
  %v384 = vld [vmem:[%s7 + $0x10] sm:$0xf]
  %v385 = vld [vmem:[%s7 + $0x14] sm:$0xf]
  %v386 = vld [vmem:[%s7 + $0x18] sm:$0xf]
  %v387 = vld [vmem:[%s7 + $0x1c] sm:$0xf]
  %v388 = vld [vmem:[%s7 + $0x20] sm:$0xf]
  %v389 = vld [vmem:[%s7 + $0x24] sm:$0xf]
  %v390 = vld [vmem:[%s7 + $0x28] sm:$0xf]
  %v391 = vld [vmem:[%s7 + $0x2c] sm:$0xf]
  %v392 = vld [vmem:[%s7 + $0x30] sm:$0xf]
  %v393 = vld [vmem:[%s7 + $0x34] sm:$0xf]
  %v394 = vld [vmem:[%s7 + $0x38] sm:$0xf]
  %v395 = vld [vmem:[%s7 + $0x3c] sm:$0xf]
  %v396 = vld [vmem:[%s8] sm:$0x1]
  %v398 = vlaneseq
  %v399 = vshrl.u32 %v398, 7
  %v400 = vsub.s32 0, %v399
  %v401 = vrot.slane %v396, %v400
  %v419 = vunpack.c.l.b16 %v380
  %v420 = vunpack.c.l.b16 %v381
  %v421 = vunpack.c.l.b16 %v382
  %v422 = vunpack.c.l.b16 %v383
  %v423 = vunpack.c.l.b16 %v384
  %v424 = vunpack.c.l.b16 %v385
  %v425 = vunpack.c.l.b16 %v386
  %v426 = vunpack.c.l.b16 %v387
  %v427 = vunpack.c.l.b16 %v388
  %v428 = vunpack.c.l.b16 %v389
  %v429 = vunpack.c.l.b16 %v390
  %v430 = vunpack.c.l.b16 %v391
  %v431 = vunpack.c.l.b16 %v392
  %v432 = vunpack.c.l.b16 %v393
  %v433 = vunpack.c.l.b16 %v394
  %v434 = vunpack.c.l.b16 %v395
  %v435 = vpack.c.b16 %v420, %v419
  %v436 = vpack.c.b16 %v422, %v421
  %v437 = vpack.c.b16 %v424, %v423
  %v438 = vpack.c.b16 %v426, %v425
  %v439 = vpack.c.b16 %v428, %v427
  %v440 = vpack.c.b16 %v430, %v429
  %v441 = vpack.c.b16 %v432, %v431
  %v442 = vpack.c.b16 %v434, %v433
  %451 = vmatprep.subr.bf16.mxu0 0
  %452 = vmatpush1.bf16.msra.mxu0 %v435
  %453 = vmatprep.subr.bf16.mxu0 0
  %454 = vmatpush1.bf16.msra.mxu0 %v436
  %455 = vmatprep.subr.bf16.mxu0 0
  %456 = vmatpush1.bf16.msra.mxu0 %v437
  %457 = vmatprep.subr.bf16.mxu0 0
  %458 = vmatpush1.bf16.msra.mxu0 %v438
  %459 = vmatprep.subr.bf16.mxu0 0
  %460 = vmatpush1.bf16.msra.mxu0 %v439
  %461 = vmatprep.subr.bf16.mxu0 0
  %462 = vmatpush1.bf16.msra.mxu0 %v440
  %463 = vmatprep.subr.bf16.mxu0 0
  %464 = vmatpush1.bf16.msra.mxu0 %v441
  %465 = vmatprep.subr.bf16.mxu0 0
  %466 = vmatpush1.bf16.msra.mxu0 %v442
  %467 = vmatprep.subr.bf16.mxu0 0
  %468 = vmatpush1.bf16.msra.mxu0 0
  %469 = vmatprep.subr.bf16.mxu0 0
  %470 = vmatpush1.bf16.msra.mxu0 0
  %471 = vmatprep.subr.bf16.mxu0 0
  %472 = vmatpush1.bf16.msra.mxu0 0
  %473 = vmatprep.subr.bf16.mxu0 0
  %474 = vmatpush1.bf16.msra.mxu0 0
  %475 = vmatprep.subr.bf16.mxu0 0
  %476 = vmatpush1.bf16.msra.mxu0 0
  %477 = vmatprep.subr.bf16.mxu0 0
  %478 = vmatpush1.bf16.msra.mxu0 0
  %479 = vmatprep.subr.bf16.mxu0 0
  %480 = vmatpush1.bf16.msra.mxu0 0
  %481 = vmatprep.subr.bf16.mxu0 0
  %482 = vmatpush1.bf16.msra.mxu0 0
  %483 = vmatprep.mubr.bf16.mxu0 0
  %484 = vmatmul.mubr.bf16.gmra.mrb[0].mxu0 %v379
  %v485 = vpop.f32.mrb[0].mxu0
  %v486 = vadd.f32 %v401, %v485
  %v487 = vpop.f32.mrb[0].mxu0
  %v488 = vpop.f32.mrb[0].mxu0
  %v489 = vpop.f32.mrb[0].mxu0
  %490 = vdwg.mxu0
  %491 = vst [vmem:[%s9] sm:$0x3] %v486
  // Predicated region
  $region42: #{_mlp_decoder_forward_impl.1} parent=0 // pred_check
    _
  $region43: #{_mlp_decoder_forward_impl.1} parent=0 // pred_check_branch
    %493 = sbr.rel (0) target = $region45
  $region44: #{_mlp_decoder_forward_impl.1} parent=0 // pred_region
    _
  $region45: #{_mlp_decoder_forward_impl.1} parent=0 // pred_fallthru
    _
  // Predicated region
  $region46: #{_mlp_decoder_forward_impl.1} parent=0 // pred_check
    _
  $region47: #{_mlp_decoder_forward_impl.1} parent=0 // pred_check_branch
    %495 = sbr.rel (0) target = $region49
  $region48: #{_mlp_decoder_forward_impl.1} parent=0 // pred_region
    _
  $region49: #{_mlp_decoder_forward_impl.1} parent=0 // pred_fallthru
    _

// kernel: _mlp_decoder_forward_impl.1
$region0: #{_mlp_decoder_forward_impl.1}
  #allocation0 [shape = 'u32[]', space=smem, size = 0x4, offset = 0x4, fixed_abs, tag = 'smem constant byte address 0x4 - core index']
  #allocation1 [shape = 'u32[144,128]{1,0:T(1,128)}', space=vmem, size = 0x12000, scoped, tag = 'internal scratch']
  #allocation2 [shape = 'bf16[2,128]{1,0:T(2,128)(2,1)}', space=vmem, size = 0x200, scoped, tag = 'scratch operand']
  %s0 = inlined_call_operand.vmem [shape: f32[2,128], index: 0, kind: input, shape index: {}]
  %s1 = inlined_call_operand.vmem [shape: bf16[128,128], index: 1, kind: input, shape index: {}]
  %s2 = inlined_call_operand.vmem [shape: f32[1,128], index: 2, kind: input, shape index: {}]
  %s3 = inlined_call_operand.vmem [shape: bf16[128,128], index: 3, kind: input, shape index: {}]
  %s4 = inlined_call_operand.vmem [shape: f32[1,128], index: 4, kind: input, shape index: {}]
  %s5 = inlined_call_operand.vmem [shape: bf16[128,128], index: 5, kind: input, shape index: {}]
  %s6 = inlined_call_operand.vmem [shape: f32[1,128], index: 6, kind: input, shape index: {}]
  %s7 = inlined_call_operand.vmem [shape: bf16[128,128], index: 7, kind: input, shape index: {}]
  %s8 = inlined_call_operand.vmem [shape: f32[1,128], index: 8, kind: input, shape index: {}]
  %s9 = inlined_call_operand.vmem [shape: f32[2,128], index: 9, kind: output, shape index: {}]
  %s10 = sld [smem:[#allocation0]]
  $region50: #{_mlp_decoder_forward_impl.1} parent=0
    _
  %s12 = ssub.s32 1, %s10
  %s13 = scalar_select 0, %s12, %s10
  // Predicated region
  $region2: #{_mlp_decoder_forward_impl.1} parent=0 // pred_check
    _
  $region3: #{_mlp_decoder_forward_impl.1} parent=0 // pred_check_branch
    %15 = sbr.rel (0) target = $region5
  $region4: #{_mlp_decoder_forward_impl.1} parent=0 // pred_region
    _
  $region5: #{_mlp_decoder_forward_impl.1} parent=0 // pred_fallthru
    _
  // Predicated region
  $region6: #{_mlp_decoder_forward_impl.1} parent=0 // pred_check
    _
  $region7: #{_mlp_decoder_forward_impl.1} parent=0 // pred_check_branch
    %17 = sbr.rel (0) target = $region9
  $region8: #{_mlp_decoder_forward_impl.1} parent=0 // pred_region
    _
  $region9: #{_mlp_decoder_forward_impl.1} parent=0 // pred_fallthru
    _
  // Predicated region
  $region10: #{_mlp_decoder_forward_impl.1} parent=0 // pred_check
    _
  $region11: #{_mlp_decoder_forward_impl.1} parent=0 // pred_check_branch
    %19 = sbr.rel (0) target = $region13
  $region12: #{_mlp_decoder_forward_impl.1} parent=0 // pred_region
    _
  $region13: #{_mlp_decoder_forward_impl.1} parent=0 // pred_fallthru
    _
  // Predicated region
  $region14: #{_mlp_decoder_forward_impl.1} parent=0 // pred_check
    _
  $region15: #{_mlp_decoder_forward_impl.1} parent=0 // pred_check_branch
    %21 = sbr.rel (0) target = $region17
  $region16: #{_mlp_decoder_forward_impl.1} parent=0 // pred_region
    _
  $region17: #{_mlp_decoder_forward_impl.1} parent=0 // pred_fallthru
    _
  // Predicated region
  $region18: #{_mlp_decoder_forward_impl.1} parent=0 // pred_check
    _
  $region19: #{_mlp_decoder_forward_impl.1} parent=0 // pred_check_branch
    %23 = sbr.rel (0) target = $region21
  $region20: #{_mlp_decoder_forward_impl.1} parent=0 // pred_region
    _
  $region21: #{_mlp_decoder_forward_impl.1} parent=0 // pred_fallthru
    _
  // Predicated region
  $region22: #{_mlp_decoder_forward_impl.1} parent=0 // pred_check
    _
  $region23: #{_mlp_decoder_forward_impl.1} parent=0 // pred_check_branch
    %25 = sbr.rel (0) target = $region25
  $region24: #{_mlp_decoder_forward_impl.1} parent=0 // pred_region
    _
  $region25: #{_mlp_decoder_forward_impl.1} parent=0 // pred_fallthru
    _
  // Predicated region
  $region26: #{_mlp_decoder_forward_impl.1} parent=0 // pred_check
    _
  $region27: #{_mlp_decoder_forward_impl.1} parent=0 // pred_check_branch
    %27 = sbr.rel (0) target = $region29
  $region28: #{_mlp_decoder_forward_impl.1} parent=0 // pred_region
    _
  $region29: #{_mlp_decoder_forward_impl.1} parent=0 // pred_fallthru
    _
  // Predicated region
  $region30: #{_mlp_decoder_forward_impl.1} parent=0 // pred_check
    _
  $region31: #{_mlp_decoder_forward_impl.1} parent=0 // pred_check_branch
    %29 = sbr.rel (0) target = $region33
  $region32: #{_mlp_decoder_forward_impl.1} parent=0 // pred_region
    _
  $region33: #{_mlp_decoder_forward_impl.1} parent=0 // pred_fallthru
    _
  // Predicated region
  $region34: #{_mlp_decoder_forward_impl.1} parent=0 // pred_check
    _
  $region35: #{_mlp_decoder_forward_impl.1} parent=0 // pred_check_branch
    %31 = sbr.rel (0) target = $region37
  $region36: #{_mlp_decoder_forward_impl.1} parent=0 // pred_region
    _
  $region37: #{_mlp_decoder_forward_impl.1} parent=0 // pred_fallthru
    _
  %p33 = scmp.eq.s32.totalorder 0, 0
  // Predicated region
  $region38: #{_mlp_decoder_forward_impl.1} parent=0 // pred_check
    %p34 = pneg %p33
  $region39: #{_mlp_decoder_forward_impl.1} parent=0 // pred_check_branch
    %36 = sbr.rel (%p34) target = $region41
  $region40: #{_mlp_decoder_forward_impl.1} parent=0 // pred_region
    %v37 = vld [vmem:[%s0] sm:$0x3]
    %v38 = vpack.c.bf16 %v37, %v37
    %v39 = vld [vmem:[%s1] sm:$0xf]
    %v40 = vld [vmem:[%s1 + $0x4] sm:$0xf]
    %v41 = vld [vmem:[%s1 + $0x8] sm:$0xf]
    %v42 = vld [vmem:[%s1 + $0xc] sm:$0xf]
    %v43 = vld [vmem:[%s1 + $0x10] sm:$0xf]
    %v44 = vld [vmem:[%s1 + $0x14] sm:$0xf]
    %v45 = vld [vmem:[%s1 + $0x18] sm:$0xf]
    %v46 = vld [vmem:[%s1 + $0x1c] sm:$0xf]
    %v47 = vld [vmem:[%s1 + $0x20] sm:$0xf]
    %v48 = vld [vmem:[%s1 + $0x24] sm:$0xf]
    %v49 = vld [vmem:[%s1 + $0x28] sm:$0xf]
    %v50 = vld [vmem:[%s1 + $0x2c] sm:$0xf]
    %v51 = vld [vmem:[%s1 + $0x30] sm:$0xf]
    %v52 = vld [vmem:[%s1 + $0x34] sm:$0xf]
    %v53 = vld [vmem:[%s1 + $0x38] sm:$0xf]
    %v54 = vld [vmem:[%s1 + $0x3c] sm:$0xf]
    %v55 = vld [vmem:[%s2] sm:$0x1]
    %v57 = vlaneseq
    %v58 = vshrl.u32 %v57, 7
    %v59 = vsub.s32 0, %v58
    %v60 = vrot.slane %v55, %v59
    %v78 = vunpack.c.l.b16 %v39
    %v79 = vunpack.c.l.b16 %v40
    %v80 = vunpack.c.l.b16 %v41
    %v81 = vunpack.c.l.b16 %v42
    %v82 = vunpack.c.l.b16 %v43
    %v83 = vunpack.c.l.b16 %v44
    %v84 = vunpack.c.l.b16 %v45
    %v85 = vunpack.c.l.b16 %v46
    %v86 = vunpack.c.l.b16 %v47
    %v87 = vunpack.c.l.b16 %v48
    %v88 = vunpack.c.l.b16 %v49
    %v89 = vunpack.c.l.b16 %v50
    %v90 = vunpack.c.l.b16 %v51
    %v91 = vunpack.c.l.b16 %v52
    %v92 = vunpack.c.l.b16 %v53
    %v93 = vunpack.c.l.b16 %v54
    %v94 = vpack.c.b16 %v79, %v78
    %v95 = vpack.c.b16 %v81, %v80
    %v96 = vpack.c.b16 %v83, %v82
    %v97 = vpack.c.b16 %v85, %v84
    %v98 = vpack.c.b16 %v87, %v86
    %v99 = vpack.c.b16 %v89, %v88
    %v100 = vpack.c.b16 %v91, %v90
    %v101 = vpack.c.b16 %v93, %v92
    %110 = vmatprep.subr.bf16.mxu0 0
    %111 = vmatpush1.bf16.msra.mxu0 %v94
    %112 = vmatprep.subr.bf16.mxu0 0
    %113 = vmatpush1.bf16.msra.mxu0 %v95
    %114 = vmatprep.subr.bf16.mxu0 0
    %115 = vmatpush1.bf16.msra.mxu0 %v96
    %116 = vmatprep.subr.bf16.mxu0 0
    %117 = vmatpush1.bf16.msra.mxu0 %v97
    %118 = vmatprep.subr.bf16.mxu0 0
    %119 = vmatpush1.bf16.msra.mxu0 %v98
    %120 = vmatprep.subr.bf16.mxu0 0
    %121 = vmatpush1.bf16.msra.mxu0 %v99
    %122 = vmatprep.subr.bf16.mxu0 0
    %123 = vmatpush1.bf16.msra.mxu0 %v100
    %124 = vmatprep.subr.bf16.mxu0 0
    %125 = vmatpush1.bf16.msra.mxu0 %v101
    %126 = vmatprep.subr.bf16.mxu0 0
    %127 = vmatpush1.bf16.msra.mxu0 0
    %128 = vmatprep.subr.bf16.mxu0 0
    %129 = vmatpush1.bf16.msra.mxu0 0
    %130 = vmatprep.subr.bf16.mxu0 0
    %131 = vmatpush1.bf16.msra.mxu0 0
    %132 = vmatprep.subr.bf16.mxu0 0
    %133 = vmatpush1.bf16.msra.mxu0 0
    %134 = vmatprep.subr.bf16.mxu0 0
    %135 = vmatpush1.bf16.msra.mxu0 0
    %136 = vmatprep.subr.bf16.mxu0 0
    %137 = vmatpush1.bf16.msra.mxu0 0
    %138 = vmatprep.subr.bf16.mxu0 0
    %139 = vmatpush1.bf16.msra.mxu0 0
    %140 = vmatprep.subr.bf16.mxu0 0
    %141 = vmatpush1.bf16.msra.mxu0 0
    %142 = vmatprep.mubr.bf16.mxu0 0
    %143 = vmatmul.mubr.bf16.gmra.mrb[0].mxu0 %v38
    %v144 = vpop.f32.mrb[0].mxu0
    %v145 = vadd.f32 %v60, %v144
    %v146 = vpop.f32.mrb[0].mxu0
    %v147 = vpop.f32.mrb[0].mxu0
    %v148 = vpop.f32.mrb[0].mxu0
    %149 = vdwg.mxu0
    %v150 = vmax.f32 %v145, 0.0
    %v151 = vpack.c.bf16 %v150, %v150
    %v152 = vld [vmem:[%s3] sm:$0xf]
    %v153 = vld [vmem:[%s3 + $0x4] sm:$0xf]
    %v154 = vld [vmem:[%s3 + $0x8] sm:$0xf]
    %v155 = vld [vmem:[%s3 + $0xc] sm:$0xf]
    %v156 = vld [vmem:[%s3 + $0x10] sm:$0xf]
    %v157 = vld [vmem:[%s3 + $0x14] sm:$0xf]
    %v158 = vld [vmem:[%s3 + $0x18] sm:$0xf]
    %v159 = vld [vmem:[%s3 + $0x1c] sm:$0xf]
    %v160 = vld [vmem:[%s3 + $0x20] sm:$0xf]
    %v161 = vld [vmem:[%s3 + $0x24] sm:$0xf]
    %v162 = vld [vmem:[%s3 + $0x28] sm:$0xf]
    %v163 = vld [vmem:[%s3 + $0x2c] sm:$0xf]
    %v164 = vld [vmem:[%s3 + $0x30] sm:$0xf]
    %v165 = vld [vmem:[%s3 + $0x34] sm:$0xf]
    %v166 = vld [vmem:[%s3 + $0x38] sm:$0xf]
    %v167 = vld [vmem:[%s3 + $0x3c] sm:$0xf]
    %v168 = vld [vmem:[%s4] sm:$0x1]
    %v170 = vlaneseq
    %v171 = vshrl.u32 %v170, 7
    %v172 = vsub.s32 0, %v171
    %v173 = vrot.slane %v168, %v172
    %v191 = vunpack.c.l.b16 %v152
    %v192 = vunpack.c.l.b16 %v153
    %v193 = vunpack.c.l.b16 %v154
    %v194 = vunpack.c.l.b16 %v155
    %v195 = vunpack.c.l.b16 %v156
    %v196 = vunpack.c.l.b16 %v157
    %v197 = vunpack.c.l.b16 %v158
    %v198 = vunpack.c.l.b16 %v159
    %v199 = vunpack.c.l.b16 %v160
    %v200 = vunpack.c.l.b16 %v161
    %v201 = vunpack.c.l.b16 %v162
    %v202 = vunpack.c.l.b16 %v163
    %v203 = vunpack.c.l.b16 %v164
    %v204 = vunpack.c.l.b16 %v165
    %v205 = vunpack.c.l.b16 %v166
    %v206 = vunpack.c.l.b16 %v167
    %v207 = vpack.c.b16 %v192, %v191
    %v208 = vpack.c.b16 %v194, %v193
    %v209 = vpack.c.b16 %v196, %v195
    %v210 = vpack.c.b16 %v198, %v197
    %v211 = vpack.c.b16 %v200, %v199
    %v212 = vpack.c.b16 %v202, %v201
    %v213 = vpack.c.b16 %v204, %v203
    %v214 = vpack.c.b16 %v206, %v205
    %223 = vmatprep.subr.bf16.mxu0 0
    %224 = vmatpush1.bf16.msra.mxu0 %v207
    %225 = vmatprep.subr.bf16.mxu0 0
    %226 = vmatpush1.bf16.msra.mxu0 %v208
    %227 = vmatprep.subr.bf16.mxu0 0
    %228 = vmatpush1.bf16.msra.mxu0 %v209
    %229 = vmatprep.subr.bf16.mxu0 0
    %230 = vmatpush1.bf16.msra.mxu0 %v210
    %231 = vmatprep.subr.bf16.mxu0 0
    %232 = vmatpush1.bf16.msra.mxu0 %v211
    %233 = vmatprep.subr.bf16.mxu0 0
    %234 = vmatpush1.bf16.msra.mxu0 %v212
    %235 = vmatprep.subr.bf16.mxu0 0
    %236 = vmatpush1.bf16.msra.mxu0 %v213
    %237 = vmatprep.subr.bf16.mxu0 0
    %238 = vmatpush1.bf16.msra.mxu0 %v214
    %239 = vmatprep.subr.bf16.mxu0 0
    %240 = vmatpush1.bf16.msra.mxu0 0
    %241 = vmatprep.subr.bf16.mxu0 0
    %242 = vmatpush1.bf16.msra.mxu0 0
    %243 = vmatprep.subr.bf16.mxu0 0
    %244 = vmatpush1.bf16.msra.mxu0 0
    %245 = vmatprep.subr.bf16.mxu0 0
    %246 = vmatpush1.bf16.msra.mxu0 0
    %247 = vmatprep.subr.bf16.mxu0 0
    %248 = vmatpush1.bf16.msra.mxu0 0
    %249 = vmatprep.subr.bf16.mxu0 0
    %250 = vmatpush1.bf16.msra.mxu0 0
    %251 = vmatprep.subr.bf16.mxu0 0
    %252 = vmatpush1.bf16.msra.mxu0 0
    %253 = vmatprep.subr.bf16.mxu0 0
    %254 = vmatpush1.bf16.msra.mxu0 0
    %255 = vmatprep.mubr.bf16.mxu0 0
    %256 = vmatmul.mubr.bf16.gmra.mrb[0].mxu0 %v151
    %v257 = vpop.f32.mrb[0].mxu0
    %v258 = vadd.f32 %v173, %v257
    %v259 = vpop.f32.mrb[0].mxu0
    %v260 = vpop.f32.mrb[0].mxu0
    %v261 = vpop.f32.mrb[0].mxu0
    %262 = vdwg.mxu0
    %v263 = vmax.f32 %v258, 0.0
    %v264 = vpack.c.bf16 %v263, %v263
    %v265 = vld [vmem:[%s5] sm:$0xf]
    %v266 = vld [vmem:[%s5 + $0x4] sm:$0xf]
    %v267 = vld [vmem:[%s5 + $0x8] sm:$0xf]
    %v268 = vld [vmem:[%s5 + $0xc] sm:$0xf]
    %v269 = vld [vmem:[%s5 + $0x10] sm:$0xf]
    %v270 = vld [vmem:[%s5 + $0x14] sm:$0xf]
    %v271 = vld [vmem:[%s5 + $0x18] sm:$0xf]
    %v272 = vld [vmem:[%s5 + $0x1c] sm:$0xf]
    %v273 = vld [vmem:[%s5 + $0x20] sm:$0xf]
    %v274 = vld [vmem:[%s5 + $0x24] sm:$0xf]
    %v275 = vld [vmem:[%s5 + $0x28] sm:$0xf]
    %v276 = vld [vmem:[%s5 + $0x2c] sm:$0xf]
    %v277 = vld [vmem:[%s5 + $0x30] sm:$0xf]
    %v278 = vld [vmem:[%s5 + $0x34] sm:$0xf]
    %v279 = vld [vmem:[%s5 + $0x38] sm:$0xf]
    %v280 = vld [vmem:[%s5 + $0x3c] sm:$0xf]
    %v281 = vld [vmem:[%s6] sm:$0x1]
    %v283 = vlaneseq
    %v284 = vshrl.u32 %v283, 7
    %v285 = vsub.s32 0, %v284
    %v286 = vrot.slane %v281, %v285
    %v304 = vunpack.c.l.b16 %v265
    %v305 = vunpack.c.l.b16 %v266
    %v306 = vunpack.c.l.b16 %v267
    %v307 = vunpack.c.l.b16 %v268
    %v308 = vunpack.c.l.b16 %v269
    %v309 = vunpack.c.l.b16 %v270
    %v310 = vunpack.c.l.b16 %v271
    %v311 = vunpack.c.l.b16 %v272
    %v312 = vunpack.c.l.b16 %v273
    %v313 = vunpack.c.l.b16 %v274
    %v314 = vunpack.c.l.b16 %v275
    %v315 = vunpack.c.l.b16 %v276
    %v316 = vunpack.c.l.b16 %v277
    %v317 = vunpack.c.l.b16 %v278
    %v318 = vunpack.c.l.b16 %v279
    %v319 = vunpack.c.l.b16 %v280
    %v320 = vpack.c.b16 %v305, %v304
    %v321 = vpack.c.b16 %v307, %v306
    %v322 = vpack.c.b16 %v309, %v308
    %v323 = vpack.c.b16 %v311, %v310
    %v324 = vpack.c.b16 %v313, %v312
    %v325 = vpack.c.b16 %v315, %v314
    %v326 = vpack.c.b16 %v317, %v316
    %v327 = vpack.c.b16 %v319, %v318
    %336 = vmatprep.subr.bf16.mxu0 0
    %337 = vmatpush1.bf16.msra.mxu0 %v320
    %338 = vmatprep.subr.bf16.mxu0 0
    %339 = vmatpush1.bf16.msra.mxu0 %v321
    %340 = vmatprep.subr.bf16.mxu0 0
    %341 = vmatpush1.bf16.msra.mxu0 %v322
    %342 = vmatprep.subr.bf16.mxu0 0
    %343 = vmatpush1.bf16.msra.mxu0 %v323
    %344 = vmatprep.subr.bf16.mxu0 0
    %345 = vmatpush1.bf16.msra.mxu0 %v324
    %346 = vmatprep.subr.bf16.mxu0 0
    %347 = vmatpush1.bf16.msra.mxu0 %v325
    %348 = vmatprep.subr.bf16.mxu0 0
    %349 = vmatpush1.bf16.msra.mxu0 %v326
    %350 = vmatprep.subr.bf16.mxu0 0
    %351 = vmatpush1.bf16.msra.mxu0 %v327
    %352 = vmatprep.subr.bf16.mxu0 0
    %353 = vmatpush1.bf16.msra.mxu0 0
    %354 = vmatprep.subr.bf16.mxu0 0
    %355 = vmatpush1.bf16.msra.mxu0 0
    %356 = vmatprep.subr.bf16.mxu0 0
    %357 = vmatpush1.bf16.msra.mxu0 0
    %358 = vmatprep.subr.bf16.mxu0 0
    %359 = vmatpush1.bf16.msra.mxu0 0
    %360 = vmatprep.subr.bf16.mxu0 0
    %361 = vmatpush1.bf16.msra.mxu0 0
    %362 = vmatprep.subr.bf16.mxu0 0
    %363 = vmatpush1.bf16.msra.mxu0 0
    %364 = vmatprep.subr.bf16.mxu0 0
    %365 = vmatpush1.bf16.msra.mxu0 0
    %366 = vmatprep.subr.bf16.mxu0 0
    %367 = vmatpush1.bf16.msra.mxu0 0
    %368 = vmatprep.mubr.bf16.mxu0 0
    %369 = vmatmul.mubr.bf16.gmra.mrb[0].mxu0 %v264
    %v370 = vpop.f32.mrb[0].mxu0
    %v371 = vadd.f32 %v286, %v370
    %v372 = vpop.f32.mrb[0].mxu0
    %v373 = vpop.f32.mrb[0].mxu0
    %v374 = vpop.f32.mrb[0].mxu0
    %375 = vdwg.mxu0
    %v376 = vmax.f32 %v371, 0.0
    %v377 = vpack.c.bf16 %v376, %v376
    %378 = vst [vmem:[#allocation2] sm:$0x1] %v377
  $region41: #{_mlp_decoder_forward_impl.1} parent=0 // pred_fallthru
    _
  %v379 = vld [vmem:[#allocation2] sm:$0x1]
  %v380 = vld [vmem:[%s7] sm:$0xf]
  %v381 = vld [vmem:[%s7 + $0x4] sm:$0xf]
  %v382 = vld [vmem:[%s7 + $0x8] sm:$0xf]
  %v383 = vld [vmem:[%s7 + $0xc] sm:$0xf]
  %v384 = vld [vmem:[%s7 + $0x10] sm:$0xf]
  %v385 = vld [vmem:[%s7 + $0x14] sm:$0xf]
  %v386 = vld [vmem:[%s7 + $0x18] sm:$0xf]
  %v387 = vld [vmem:[%s7 + $0x1c] sm:$0xf]
  %v388 = vld [vmem:[%s7 + $0x20] sm:$0xf]
  %v389 = vld [vmem:[%s7 + $0x24] sm:$0xf]
  %v390 = vld [vmem:[%s7 + $0x28] sm:$0xf]
  %v391 = vld [vmem:[%s7 + $0x2c] sm:$0xf]
  %v392 = vld [vmem:[%s7 + $0x30] sm:$0xf]
  %v393 = vld [vmem:[%s7 + $0x34] sm:$0xf]
  %v394 = vld [vmem:[%s7 + $0x38] sm:$0xf]
  %v395 = vld [vmem:[%s7 + $0x3c] sm:$0xf]
  %v396 = vld [vmem:[%s8] sm:$0x1]
  %v398 = vlaneseq
  %v399 = vshrl.u32 %v398, 7
  %v400 = vsub.s32 0, %v399
  %v401 = vrot.slane %v396, %v400
  %v419 = vunpack.c.l.b16 %v380
  %v420 = vunpack.c.l.b16 %v381
  %v421 = vunpack.c.l.b16 %v382
  %v422 = vunpack.c.l.b16 %v383
  %v423 = vunpack.c.l.b16 %v384
  %v424 = vunpack.c.l.b16 %v385
  %v425 = vunpack.c.l.b16 %v386
  %v426 = vunpack.c.l.b16 %v387
  %v427 = vunpack.c.l.b16 %v388
  %v428 = vunpack.c.l.b16 %v389
  %v429 = vunpack.c.l.b16 %v390
  %v430 = vunpack.c.l.b16 %v391
  %v431 = vunpack.c.l.b16 %v392
  %v432 = vunpack.c.l.b16 %v393
  %v433 = vunpack.c.l.b16 %v394
  %v434 = vunpack.c.l.b16 %v395
  %v435 = vpack.c.b16 %v420, %v419
  %v436 = vpack.c.b16 %v422, %v421
  %v437 = vpack.c.b16 %v424, %v423
  %v438 = vpack.c.b16 %v426, %v425
  %v439 = vpack.c.b16 %v428, %v427
  %v440 = vpack.c.b16 %v430, %v429
  %v441 = vpack.c.b16 %v432, %v431
  %v442 = vpack.c.b16 %v434, %v433
  %451 = vmatprep.subr.bf16.mxu0 0
  %452 = vmatpush1.bf16.msra.mxu0 %v435
  %453 = vmatprep.subr.bf16.mxu0 0
  %454 = vmatpush1.bf16.msra.mxu0 %v436
  %455 = vmatprep.subr.bf16.mxu0 0
  %456 = vmatpush1.bf16.msra.mxu0 %v437
  %457 = vmatprep.subr.bf16.mxu0 0
  %458 = vmatpush1.bf16.msra.mxu0 %v438
  %459 = vmatprep.subr.bf16.mxu0 0
  %460 = vmatpush1.bf16.msra.mxu0 %v439
  %461 = vmatprep.subr.bf16.mxu0 0
  %462 = vmatpush1.bf16.msra.mxu0 %v440
  %463 = vmatprep.subr.bf16.mxu0 0
  %464 = vmatpush1.bf16.msra.mxu0 %v441
  %465 = vmatprep.subr.bf16.mxu0 0
  %466 = vmatpush1.bf16.msra.mxu0 %v442
  %467 = vmatprep.subr.bf16.mxu0 0
  %468 = vmatpush1.bf16.msra.mxu0 0
  %469 = vmatprep.subr.bf16.mxu0 0
  %470 = vmatpush1.bf16.msra.mxu0 0
  %471 = vmatprep.subr.bf16.mxu0 0
  %472 = vmatpush1.bf16.msra.mxu0 0
  %473 = vmatprep.subr.bf16.mxu0 0
  %474 = vmatpush1.bf16.msra.mxu0 0
  %475 = vmatprep.subr.bf16.mxu0 0
  %476 = vmatpush1.bf16.msra.mxu0 0
  %477 = vmatprep.subr.bf16.mxu0 0
  %478 = vmatpush1.bf16.msra.mxu0 0
  %479 = vmatprep.subr.bf16.mxu0 0
  %480 = vmatpush1.bf16.msra.mxu0 0
  %481 = vmatprep.subr.bf16.mxu0 0
  %482 = vmatpush1.bf16.msra.mxu0 0
  %483 = vmatprep.mubr.bf16.mxu0 0
  %484 = vmatmul.mubr.bf16.gmra.mrb[0].mxu0 %v379
  %v485 = vpop.f32.mrb[0].mxu0
  %v486 = vadd.f32 %v401, %v485
  %v487 = vpop.f32.mrb[0].mxu0
  %v488 = vpop.f32.mrb[0].mxu0
  %v489 = vpop.f32.mrb[0].mxu0
  %490 = vdwg.mxu0
  %491 = vst [vmem:[%s9] sm:$0x3] %v486
  // Predicated region
  $region42: #{_mlp_decoder_forward_impl.1} parent=0 // pred_check
    _
  $region43: #{_mlp_decoder_forward_impl.1} parent=0 // pred_check_branch
    %493 = sbr.rel (0) target = $region45
  $region44: #{_mlp_decoder_forward_impl.1} parent=0 // pred_region
    _
  $region45: #{_mlp_decoder_forward_impl.1} parent=0 // pred_fallthru
    _
  // Predicated region
  $region46: #{_mlp_decoder_forward_impl.1} parent=0 // pred_check
    _
  $region47: #{_mlp_decoder_forward_impl.1} parent=0 // pred_check_branch
    %495 = sbr.rel (0) target = $region49
  $region48: #{_mlp_decoder_forward_impl.1} parent=0 // pred_region
    _
  $region49: #{_mlp_decoder_forward_impl.1} parent=0 // pred_fallthru
    _

</llo_original>
